<compile_context>
chip_gen: v5e
topology: v5e:2x2
jax: 0.10.0
libtpu: 0.0.40
codegen_flags: <defaults>
</compile_context>

<pallas_src>
import jax
import jax.numpy as jnp
from jax.experimental import pallas as pl
from jax.experimental.pallas import tpu as pltpu


_MXU_PRECISION = jax.lax.Precision.HIGHEST       # true-f32 dot (matches torch.mm)
_VMEM_PLAN_BUDGET = 36 * 1024 * 1024             # planning budget, fits v7x (64 MiB)
_VMEM_LIMIT_CAP = 48 * 1024 * 1024               # never request more than this


def _round_up(x, m):
    return ((x + m - 1) // m) * m


def _vmem_limit(est_bytes):
    """Raise the scoped-VMEM limit only when the plan needs it."""
    if est_bytes <= 12 * 1024 * 1024:            # under every generation's default
        return None
    return min(_VMEM_LIMIT_CAP, max(32 * 1024 * 1024, 2 * est_bytes))


# ----------------------------------------------------------------------------
# Kernels
# ----------------------------------------------------------------------------
def _streaming_kernel(x_ref, w_ref, b_ref, o_ref):
    """Full W and bias are VMEM-resident; x rows are streamed. No k axis."""
    o_ref[...] = (
        jnp.dot(
            x_ref[...],
            w_ref[...],
            preferred_element_type=jnp.float32,
            precision=_MXU_PRECISION,
        )
        + b_ref[...]
    ).astype(o_ref.dtype)


def _tiled_kernel(x_ref, w_ref, b_ref, o_ref, acc_ref):
    """General tiled matmul with f32 accumulator; k is the last grid axis."""
    k = pl.program_id(2)
    prod = jnp.dot(
        x_ref[...],
        w_ref[...],
        preferred_element_type=jnp.float32,
        precision=_MXU_PRECISION,
    )

    @pl.when(k == 0)
    def _():
        acc_ref[...] = prod          # write, not zero-init + add

    @pl.when(k > 0)
    def _():
        acc_ref[...] += prod

    @pl.when(k == pl.num_programs(2) - 1)
    def _():
        o_ref[...] = (acc_ref[...] + b_ref[...]).astype(o_ref.dtype)


# ----------------------------------------------------------------------------
# Tile planning
# ----------------------------------------------------------------------------
def _plan_streaming(M, K, N, budget):
    """Return a row-tile size tm for the streaming path, or None if W can't
    be made VMEM-resident within the budget."""
    itemsize = 4
    resident = 2 * itemsize * (K * N + N)        # W + bias (assume 2x buffers)
    if resident > budget:
        return None
    cands = [M] + [c for c in (512, 384, 256, 128) if c < M]
    fitting = [c for c in cands
               if resident + 2 * itemsize * c * (K + N) <= budget]
    if not fitting:
        return None
    pads = {c: _round_up(M, c) - M for c in fitting}
    min_pad = min(pads.values())
    slack = max(min_pad, M // 8)                 # allow small padding for big tiles
    ok = [c for c in fitting if pads[c] <= slack]
    return max(ok)


def _pick_tile(dim, align, candidates):
    d_aligned = _round_up(dim, align)
    cands = sorted({min(c, d_aligned) for c in candidates}, reverse=True)
    pads = {c: _round_up(dim, c) - dim for c in cands}
    min_pad = min(pads.values())
    slack = max(min_pad, dim // 8)
    ok = [c for c in cands if pads[c] <= slack]
    return max(ok)


def _plan_tiled(M, K, N, budget):
    tm = _pick_tile(M, 8, (512, 256, 128, 64, 32, 16, 8))
    tk = _pick_tile(K, 128, (1024, 512, 384, 256, 128))
    tn = _pick_tile(N, 128, (1024, 512, 384, 256, 128))

    def est(a, b, c):
        return 4 * (2 * (a * b + b * c + a * c + c) + a * c)

    while est(tm, tk, tn) > budget and (tk > 128 or tn > 128 or tm > 8):
        if tk >= tn and tk > 128:
            tk = max(128, (tk // 2) // 128 * 128)
        elif tn > 128:
            tn = max(128, (tn // 2) // 128 * 128)
        else:
            tm = max(8, (tm // 2) // 8 * 8)
    return tm, tk, tn, est(tm, tk, tn)


# ----------------------------------------------------------------------------
# Wrapper
# ----------------------------------------------------------------------------
def langevin_layer(x, weights, biases, *, force_tiled=False):
    """Computes x @ weights + biases with a Pallas TPU kernel.

    x:       (M, K) float32
    weights: (K, N) float32
    biases:  (N,)   float32
    returns: (M, N) float32
    """
    M, K = x.shape
    Kw, N = weights.shape
    assert K == Kw
    assert biases.shape == (N,)
    out_dtype = x.dtype
    b2d = biases.reshape(1, N)

    tm_stream = None if force_tiled else _plan_streaming(M, K, N, _VMEM_PLAN_BUDGET)

    # ---------------- Streaming path: W resident, k axis collapsed ----------
    if tm_stream is not None:
        tm = tm_stream
        Mp = _round_up(M, tm)
        xp = x if Mp == M else jnp.pad(x, ((0, Mp - M), (0, 0)))
        est = 4 * (2 * (K * N + N) + 2 * tm * (K + N))

        out_padded = pl.pallas_call(
            _streaming_kernel,
            out_shape=jax.ShapeDtypeStruct((Mp, N), out_dtype),
            grid_spec=pltpu.PrefetchScalarGridSpec(
                num_scalar_prefetch=0,
                grid=(Mp // tm,),
                in_specs=[
                    pl.BlockSpec((tm, K), lambda i: (i, 0)),   # stream x rows
                    pl.BlockSpec((K, N), lambda i: (0, 0)),    # W: DMA'd once
                    pl.BlockSpec((1, N), lambda i: (0, 0)),    # bias: DMA'd once
                ],
                out_specs=pl.BlockSpec((tm, N), lambda i: (i, 0)),
            ),
            compiler_params=pltpu.CompilerParams(
                dimension_semantics=("parallel",),
                vmem_limit_bytes=_vmem_limit(est),
            ),
        )(xp, weights, b2d)
        return out_padded if Mp == M else out_padded[:M]

    # ---------------- General tiled fallback (huge K*N) ---------------------
    tm, tk, tn, est = _plan_tiled(M, K, N, _VMEM_PLAN_BUDGET)
    Mp, Kp, Np = _round_up(M, tm), _round_up(K, tk), _round_up(N, tn)
    xp = x if (Mp == M and Kp == K) else jnp.pad(x, ((0, Mp - M), (0, Kp - K)))
    wp = (
        weights
        if (Kp == K and Np == N)
        else jnp.pad(weights, ((0, Kp - K), (0, Np - N)))
    )
    bp = b2d if Np == N else jnp.pad(b2d, ((0, 0), (0, Np - N)))

    grid = (Mp // tm, Np // tn, Kp // tk)        # reduction axis (k) last

    out_padded = pl.pallas_call(
        _tiled_kernel,
        out_shape=jax.ShapeDtypeStruct((Mp, Np), out_dtype),
        grid_spec=pltpu.PrefetchScalarGridSpec(
            num_scalar_prefetch=0,
            grid=grid,
            in_specs=[
                pl.BlockSpec((tm, tk), lambda i, j, k: (i, k)),
                pl.BlockSpec((tk, tn), lambda i, j, k: (k, j)),
                pl.BlockSpec((1, tn), lambda i, j, k: (0, j)),
            ],
            out_specs=pl.BlockSpec((tm, tn), lambda i, j, k: (i, j)),
            scratch_shapes=[pltpu.VMEM((tm, tn), jnp.float32)],
        ),
        compiler_params=pltpu.CompilerParams(
            dimension_semantics=("parallel", "parallel", "arbitrary"),
            vmem_limit_bytes=_vmem_limit(est),
        ),
    )(xp, wp, bp)

    if Mp == M and Np == N:
        return out_padded
    return out_padded[:M, :N]


# ----------------------------------------------------------------------------
# Demo / correctness checks
# ----------------------------------------------------------------------------
if __name__ == "__main__":
    key = jax.random.PRNGKey(0)
    keys = jax.random.split(key, 9)
    kx, kw, kb, kx2, kw2, kb2, kx3, kw3, kb3 = keys

    def ref_fn(x, w, b):
        return jnp.dot(x, w, precision=_MXU_PRECISION) + b

    # --- Small shapes consistent with the module: batch=8, in=32, out=16 ---
    N_rows, input_dim, output_dim = 8, 32, 16
    x = jax.random.normal(kx, (N_rows, input_dim), dtype=jnp.float32)
    weights = jax.random.uniform(
        kw, (input_dim, output_dim), minval=-0.01, maxval=0.01, dtype=jnp.float32
    )
    biases = jax.random.uniform(
        kb, (output_dim,), minval=-0.01, maxval=0.01, dtype=jnp.float32
    )
    out = jax.block_until_ready(langevin_layer(x, weights, biases))
    assert out.shape == (N_rows, output_dim)
    assert jnp.allclose(out, ref_fn(x, weights, biases), atol=1e-5, rtol=1e-5)

    # --- Larger, non-aligned shapes: streaming path, W fully VMEM-resident ---
    M2, K2, N2 = 600, 384, 320
    x2 = jax.random.normal(kx2, (M2, K2), dtype=jnp.float32)
    w2 = jax.random.uniform(kw2, (K2, N2), minval=-0.01, maxval=0.01,
                            dtype=jnp.float32)
    b2 = jax.random.uniform(kb2, (N2,), minval=-0.01, maxval=0.01,
                            dtype=jnp.float32)
    out2 = jax.block_until_ready(langevin_layer(x2, w2, b2))
    assert out2.shape == (M2, N2)
    assert jnp.allclose(out2, ref_fn(x2, w2, b2), atol=1e-4, rtol=1e-4)

    # --- Force the general tiled/accumulator fallback path -------------------
    M3, K3, N3 = 300, 1152, 640
    x3 = jax.random.normal(kx3, (M3, K3), dtype=jnp.float32)
    w3 = jax.random.uniform(kw3, (K3, N3), minval=-0.01, maxval=0.01,
                            dtype=jnp.float32)
    b3 = jax.random.uniform(kb3, (N3,), minval=-0.01, maxval=0.01,
                            dtype=jnp.float32)
    out3 = jax.block_until_ready(langevin_layer(x3, w3, b3, force_tiled=True))
    assert out3.shape == (M3, N3)
    assert jnp.allclose(out3, ref_fn(x3, w3, b3), atol=1e-4, rtol=1e-4)

    print("KERNEL_OK")
</pallas_src>

<mosaic_0001>
module attributes {stable_mosaic.version = 11 : i64} {
  func.func @_streaming_kernel(%arg0: i32, %arg1: memref<8x32xf32, #tpu.memory_space<vmem>>, %arg2: memref<32x16xf32, #tpu.memory_space<vmem>>, %arg3: memref<1x16xf32, #tpu.memory_space<vmem>>, %arg4: memref<8x16xf32, #tpu.memory_space<vmem>>) attributes {dimension_semantics = [#tpu.dimension_semantics<parallel>], iteration_bounds = array<i64: 1>, scalar_prefetch = 0 : i64, scratch_operands = 0 : i64, tpu.core_type = #tpu.core_type<tc>, window_params = [{transform_indices = @transform_0, window_bounds = array<i64: 8, 32>}, {pipeline_mode = #tpu.pipeline_mode<synchronous>, transform_indices = @transform_1, window_bounds = array<i64: 32, 16>}, {pipeline_mode = #tpu.pipeline_mode<synchronous>, transform_indices = @transform_2, window_bounds = array<i64: 1, 16>}, {transform_indices = @transform_3, window_bounds = array<i64: 8, 16>}]} {
    %c0 = arith.constant 0 : index
    %c0_0 = arith.constant 0 : index
    %0 = vector.load %arg1[%c0, %c0_0] : memref<8x32xf32, #tpu.memory_space<vmem>>, vector<8x32xf32>
    %c0_1 = arith.constant 0 : index
    %c0_2 = arith.constant 0 : index
    %1 = vector.load %arg2[%c0_1, %c0_2] : memref<32x16xf32, #tpu.memory_space<vmem>>, vector<32x16xf32>
    %cst = arith.constant dense<0.000000e+00> : vector<8x16xf32>
    %2 = tpu.matmul %0, %1, %cst {dimension_numbers = #tpu.dot_dimension_numbers<[1], [0], [0], [1], [0, 0, 1, 1], [], []>, precision = #tpu.contract_precision<fp32>} : vector<8x32xf32>, vector<32x16xf32>, vector<8x16xf32> -> vector<8x16xf32>
    %c0_3 = arith.constant 0 : index
    %c0_4 = arith.constant 0 : index
    %3 = vector.load %arg3[%c0_3, %c0_4] : memref<1x16xf32, #tpu.memory_space<vmem>>, vector<1x16xf32>
    %4 = vector.broadcast %3 : vector<1x16xf32> to vector<8x16xf32>
    %5 = arith.addf %2, %4 : vector<8x16xf32>
    %c0_5 = arith.constant 0 : index
    %c0_6 = arith.constant 0 : index
    %6 = vector.load %arg4[%c0_5, %c0_6] : memref<8x16xf32, #tpu.memory_space<vmem>>, vector<8x16xf32>
    tpu.vector_store %arg4[%c0_5, %c0_6], %5 {strides = array<i32>} : memref<8x16xf32, #tpu.memory_space<vmem>>, vector<8x16xf32>,
    return
  }
  func.func @transform_0(%arg0: i32) -> (i32, i32) {
    %c0_i32 = arith.constant 0 : i32
    %c0_i32_0 = arith.constant 0 : i32
    return %arg0, %c0_i32 : i32, i32
  }
  func.func @transform_1(%arg0: i32) -> (i32, i32) {
    %c0_i32 = arith.constant 0 : i32
    %c0_i32_0 = arith.constant 0 : i32
    %c0_i32_1 = arith.constant 0 : i32
    return %c0_i32, %c0_i32_0 : i32, i32
  }
  func.func @transform_2(%arg0: i32) -> (i32, i32) {
    %c0_i32 = arith.constant 0 : i32
    %c0_i32_0 = arith.constant 0 : i32
    %c0_i32_1 = arith.constant 0 : i32
    return %c0_i32, %c0_i32_0 : i32, i32
  }
  func.func @transform_3(%arg0: i32) -> (i32, i32) {
    %c0_i32 = arith.constant 0 : i32
    %c0_i32_0 = arith.constant 0 : i32
    return %arg0, %c0_i32 : i32, i32
  }
}

</mosaic_0001>

<llo_original>
// kernel: tpu_custom_call.1
$region0: #{tpu_custom_call.1}
  #allocation0 [shape = 'u32[]', space=smem, size = 0x4, offset = 0x4, fixed_abs, tag = 'smem constant byte address 0x4 - core index']
  #allocation1 [shape = 'u32[72,128]{1,0:T(1,128)}', space=vmem, size = 0x9000, scoped, tag = 'internal scratch']
  %s0 = inlined_call_operand.vmem [shape: f32[8,32], index: 0, kind: input, shape index: {}]
  %s1 = inlined_call_operand.vmem [shape: f32[32,16], index: 1, kind: input, shape index: {}]
  %s2 = inlined_call_operand.vmem [shape: f32[1,16], index: 2, kind: input, shape index: {}]
  %s3 = inlined_call_operand.hbm [shape: f32[8,16], index: 3, kind: output, shape index: {}]
  %s4 = sld [smem:[#allocation0]]
  $region22: #{tpu_custom_call.1} parent=0
    _
  %s6 = ssub.s32 1, %s4
  %s7 = scalar_select 0, %s6, %s4
  $region1: #{tpu_custom_call.1} parent=0
    #allocation2 [shape = 'u8[4096]{0}', space=vmem, size = 0x1000, scoped, tag = 'output window, operand 0, single buffered']
    #allocation3 [shape = 's32[1]{0}', space=sflag, size = 0x4, scoped, tag = 'scoped memory for tpu_custom_call.1']
    %8 = vsyncpa [#allocation3], 0
    // Predicated region
    $region2: #{tpu_custom_call.1} parent=1 // pred_check
      _
    $region3: #{tpu_custom_call.1} parent=1 // pred_check_branch
      %10 = sbr.rel (0) target = $region5
    $region4: #{tpu_custom_call.1} parent=1 // pred_region
      _
    $region5: #{tpu_custom_call.1} parent=1 // pred_fallthru
      _
    // Predicated region
    $region6: #{tpu_custom_call.1} parent=1 // pred_check
      _
    $region7: #{tpu_custom_call.1} parent=1 // pred_check_branch
      %12 = sbr.rel (0) target = $region9
    $region8: #{tpu_custom_call.1} parent=1 // pred_region
      _
    $region9: #{tpu_custom_call.1} parent=1 // pred_fallthru
      _
    // Predicated region
    $region10: #{tpu_custom_call.1} parent=1 // pred_check
      _
    $region11: #{tpu_custom_call.1} parent=1 // pred_check_branch
      %14 = sbr.rel (0) target = $region13
    $region12: #{tpu_custom_call.1} parent=1 // pred_region
      _
    $region13: #{tpu_custom_call.1} parent=1 // pred_fallthru
      _
    %v15 = vld [vmem:[%s0] sm:$0xff]
    %v16 = vld [vmem:[%s1] sm:$0xff]
    %v17 = vld [vmem:[%s1 + $0x8] sm:$0xff]
    %v18 = vld [vmem:[%s1 + $0x10] sm:$0xff]
    %v19 = vld [vmem:[%s1 + $0x18] sm:$0xff]
    %v20 = vld [vmem:[%s2] sm:$0x1]
    %v22 = vperm.slane %v20, 0
    %vm24 = vcmask 261120
    %v26 = vsel %vm24, %v15, 0
    %28 = vmatpush.msra.mxu0 0.0
    %29 = vmatpush.msra.mxu0 0.0
    %30 = vmatpush.msra.mxu0 0.0
    %31 = vmatpush.msra.mxu0 0.0
    %32 = vmatpush.msra.mxu0 0.0
    %33 = vmatpush.msra.mxu0 0.0
    %34 = vmatpush.msra.mxu0 0.0
    %35 = vmatpush.msra.mxu0 0.0
    %36 = vmatpush.msra.mxu0 0.0
    %37 = vmatpush.msra.mxu0 0.0
    %38 = vmatpush.msra.mxu0 0.0
    %39 = vmatpush.msra.mxu0 0.0
    %v40 = vand.u32 %v19, 4294901760
    %41 = vmatpush.msra.mxu0 %v40
    %v42 = vand.u32 %v18, 4294901760
    %43 = vmatpush.msra.mxu0 %v42
    %v44 = vand.u32 %v17, 4294901760
    %45 = vmatpush.msra.mxu0 %v44
    %v46 = vand.u32 %v16, 4294901760
    %47 = vmatpush.msra.mxu0 %v46
    %v48 = vand.u32 %v26, 4294901760
    %v49 = vsub.f32 %v26, %v48
    %v50 = vand.u32 %v49, 4294901760
    %v51 = vsub.f32 %v49, %v50
    %v52 = vand.u32 %v51, 4294901760
    %53 = vmatmul.f32.gmra.mxu0 %v52
    %v54 = vpop.f32.mrf.mxu0
    %v55 = vadd.f32 %v22, %v54
    %56 = vdwg.mxu0
    %57 = vmatpush.msra.mxu0 0.0
    %58 = vmatpush.msra.mxu0 0.0
    %59 = vmatpush.msra.mxu0 0.0
    %60 = vmatpush.msra.mxu0 0.0
    %61 = vmatpush.msra.mxu0 0.0
    %62 = vmatpush.msra.mxu0 0.0
    %63 = vmatpush.msra.mxu0 0.0
    %64 = vmatpush.msra.mxu0 0.0
    %65 = vmatpush.msra.mxu0 0.0
    %66 = vmatpush.msra.mxu0 0.0
    %67 = vmatpush.msra.mxu0 0.0
    %68 = vmatpush.msra.mxu0 0.0
    %v69 = vand.u32 %v19, 4294901760
    %v70 = vsub.f32 %v19, %v69
    %v71 = vand.u32 %v70, 4294901760
    %v72 = vsub.f32 %v70, %v71
    %v73 = vand.u32 %v72, 4294901760
    %74 = vmatpush.msra.mxu0 %v73
    %v75 = vand.u32 %v18, 4294901760
    %v76 = vsub.f32 %v18, %v75
    %v77 = vand.u32 %v76, 4294901760
    %v78 = vsub.f32 %v76, %v77
    %v79 = vand.u32 %v78, 4294901760
    %80 = vmatpush.msra.mxu0 %v79
    %v81 = vand.u32 %v17, 4294901760
    %v82 = vsub.f32 %v17, %v81
    %v83 = vand.u32 %v82, 4294901760
    %v84 = vsub.f32 %v82, %v83
    %v85 = vand.u32 %v84, 4294901760
    %86 = vmatpush.msra.mxu0 %v85
    %v87 = vand.u32 %v16, 4294901760
    %v88 = vsub.f32 %v16, %v87
    %v89 = vand.u32 %v88, 4294901760
    %v90 = vsub.f32 %v88, %v89
    %v91 = vand.u32 %v90, 4294901760
    %92 = vmatpush.msra.mxu0 %v91
    %v93 = vand.u32 %v26, 4294901760
    %94 = vmatmul.f32.gmra.mxu0 %v93
    %v95 = vpop.f32.mrf.mxu0
    %v96 = vadd.f32 %v55, %v95
    %97 = vdwg.mxu0
    %98 = vmatpush.msra.mxu0 0.0
    %99 = vmatpush.msra.mxu0 0.0
    %100 = vmatpush.msra.mxu0 0.0
    %101 = vmatpush.msra.mxu0 0.0
    %102 = vmatpush.msra.mxu0 0.0
    %103 = vmatpush.msra.mxu0 0.0
    %104 = vmatpush.msra.mxu0 0.0
    %105 = vmatpush.msra.mxu0 0.0
    %106 = vmatpush.msra.mxu0 0.0
    %107 = vmatpush.msra.mxu0 0.0
    %108 = vmatpush.msra.mxu0 0.0
    %109 = vmatpush.msra.mxu0 0.0
    %v110 = vand.u32 %v19, 4294901760
    %v111 = vsub.f32 %v19, %v110
    %112 = vmatpush.msra.mxu0 %v111
    %v113 = vand.u32 %v18, 4294901760
    %v114 = vsub.f32 %v18, %v113
    %115 = vmatpush.msra.mxu0 %v114
    %v116 = vand.u32 %v17, 4294901760
    %v117 = vsub.f32 %v17, %v116
    %118 = vmatpush.msra.mxu0 %v117
    %v119 = vand.u32 %v16, 4294901760
    %v120 = vsub.f32 %v16, %v119
    %121 = vmatpush.msra.mxu0 %v120
    %v122 = vand.u32 %v26, 4294901760
    %v123 = vsub.f32 %v26, %v122
    %124 = vmatmul.f32.gmra.mxu0 %v123
    %v125 = vpop.f32.mrf.mxu0
    %v126 = vadd.f32 %v96, %v125
    %127 = vdwg.mxu0
    %128 = vmatpush.msra.mxu0 0.0
    %129 = vmatpush.msra.mxu0 0.0
    %130 = vmatpush.msra.mxu0 0.0
    %131 = vmatpush.msra.mxu0 0.0
    %132 = vmatpush.msra.mxu0 0.0
    %133 = vmatpush.msra.mxu0 0.0
    %134 = vmatpush.msra.mxu0 0.0
    %135 = vmatpush.msra.mxu0 0.0
    %136 = vmatpush.msra.mxu0 0.0
    %137 = vmatpush.msra.mxu0 0.0
    %138 = vmatpush.msra.mxu0 0.0
    %139 = vmatpush.msra.mxu0 0.0
    %v140 = vand.u32 %v19, 4294901760
    %141 = vmatpush.msra.mxu0 %v140
    %v142 = vand.u32 %v18, 4294901760
    %143 = vmatpush.msra.mxu0 %v142
    %v144 = vand.u32 %v17, 4294901760
    %145 = vmatpush.msra.mxu0 %v144
    %v146 = vand.u32 %v16, 4294901760
    %147 = vmatpush.msra.mxu0 %v146
    %v148 = vand.u32 %v26, 4294901760
    %v149 = vsub.f32 %v26, %v148
    %v150 = vand.u32 %v149, 4294901760
    %151 = vmatmul.f32.gmra.mxu0 %v150
    %v152 = vpop.f32.mrf.mxu0
    %v153 = vadd.f32 %v126, %v152
    %154 = vdwg.mxu0
    %155 = vmatpush.msra.mxu0 0.0
    %156 = vmatpush.msra.mxu0 0.0
    %157 = vmatpush.msra.mxu0 0.0
    %158 = vmatpush.msra.mxu0 0.0
    %159 = vmatpush.msra.mxu0 0.0
    %160 = vmatpush.msra.mxu0 0.0
    %161 = vmatpush.msra.mxu0 0.0
    %162 = vmatpush.msra.mxu0 0.0
    %163 = vmatpush.msra.mxu0 0.0
    %164 = vmatpush.msra.mxu0 0.0
    %165 = vmatpush.msra.mxu0 0.0
    %166 = vmatpush.msra.mxu0 0.0
    %v167 = vand.u32 %v19, 4294901760
    %v168 = vsub.f32 %v19, %v167
    %v169 = vand.u32 %v168, 4294901760
    %170 = vmatpush.msra.mxu0 %v169
    %v171 = vand.u32 %v18, 4294901760
    %v172 = vsub.f32 %v18, %v171
    %v173 = vand.u32 %v172, 4294901760
    %174 = vmatpush.msra.mxu0 %v173
    %v175 = vand.u32 %v17, 4294901760
    %v176 = vsub.f32 %v17, %v175
    %v177 = vand.u32 %v176, 4294901760
    %178 = vmatpush.msra.mxu0 %v177
    %v179 = vand.u32 %v16, 4294901760
    %v180 = vsub.f32 %v16, %v179
    %v181 = vand.u32 %v180, 4294901760
    %182 = vmatpush.msra.mxu0 %v181
    %v183 = vand.u32 %v26, 4294901760
    %184 = vmatmul.f32.gmra.mxu0 %v183
    %v185 = vpop.f32.mrf.mxu0
    %v186 = vadd.f32 %v153, %v185
    %187 = vdwg.mxu0
    %188 = vmatpush.msra.mxu0 0.0
    %189 = vmatpush.msra.mxu0 0.0
    %190 = vmatpush.msra.mxu0 0.0
    %191 = vmatpush.msra.mxu0 0.0
    %192 = vmatpush.msra.mxu0 0.0
    %193 = vmatpush.msra.mxu0 0.0
    %194 = vmatpush.msra.mxu0 0.0
    %195 = vmatpush.msra.mxu0 0.0
    %196 = vmatpush.msra.mxu0 0.0
    %197 = vmatpush.msra.mxu0 0.0
    %198 = vmatpush.msra.mxu0 0.0
    %199 = vmatpush.msra.mxu0 0.0
    %v200 = vand.u32 %v19, 4294901760
    %201 = vmatpush.msra.mxu0 %v200
    %v202 = vand.u32 %v18, 4294901760
    %203 = vmatpush.msra.mxu0 %v202
    %v204 = vand.u32 %v17, 4294901760
    %205 = vmatpush.msra.mxu0 %v204
    %v206 = vand.u32 %v16, 4294901760
    %207 = vmatpush.msra.mxu0 %v206
    %v208 = vand.u32 %v26, 4294901760
    %209 = vmatmul.f32.gmra.mxu0 %v208
    %v210 = vpop.f32.mrf.mxu0
    %v211 = vadd.f32 %v186, %v210
    %212 = vdwg.mxu0
    %vm213 = vcmask 130048
    %214 = vst.msk [vmem:[#allocation2] sm:$0xff] %vm213, %v211
    // Predicated region
    $region14: #{tpu_custom_call.1} parent=1 // pred_check
      _
    $region15: #{tpu_custom_call.1} parent=1 // pred_check_branch
      %216 = sbr.rel (0) target = $region17
    $region16: #{tpu_custom_call.1} parent=1 // pred_region
      %218 = vsyncadd [#allocation3], 0
      %s220 = sshll.u32 [#allocation2], 4
      %s221 = int_to_ptr.vmem [resolvable:$true] %s220
      %s222 = sshll.u32 %s3, 4
      %s223 = int_to_ptr.hbm [resolvable:$true] %s222
      %225 = dma.vmem_to_hbm [thread:$0]  %s221, 128, %s223, [#allocation3]
    $region17: #{tpu_custom_call.1} parent=1 // pred_fallthru
      _
    // Predicated region
    $region18: #{tpu_custom_call.1} parent=1 // pred_check
      _
    $region19: #{tpu_custom_call.1} parent=1 // pred_check_branch
      %227 = sbr.rel (0) target = $region21
    $region20: #{tpu_custom_call.1} parent=1 // pred_region
      %229 = dma.done [#allocation3], 128
    $region21: #{tpu_custom_call.1} parent=1 // pred_fallthru
      _
    %230 = vsyncpa [#allocation3], 1

</llo_original>
